<compile_context>
chip_gen: v6e
topology: v6e:2x2x1
jax: 0.10.0
libtpu: 0.0.40
codegen_flags: <defaults>
</compile_context>

<pallas_src>
import functools

import jax
import jax.numpy as jnp
from jax.experimental import pallas as pl
from jax.experimental.pallas import tpu as pltpu


def _round_up(x, m):
    return (x + m - 1) // m * m


def mynet_cos_kernel(feats_ref, wn_t_ref, out_ref, *, temperature, sumsq_clamp):
    """One batch tile: token pooling + L2 normalize + cosine logits.

    feats_ref : (TB, L, C)       encoder token output tile
    wn_t_ref  : (C, NC_pad)      row-normalized classifier weight, pre-transposed,
                                 zero-padded to a lane-dense column count
    out_ref   : (TB, NC_pad)     logits tile
    """
    # encode(): pooling over the token axis with f32 accumulation.  The raw SUM is
    # used (cosine normalization is scale-invariant); the eps clamp was rescaled by
    # L in the wrapper so the result matches F.normalize(mean(...)) exactly.
    pooled = jnp.sum(feats_ref[...], axis=1, dtype=jnp.float32)            # (TB, C)

    # F.normalize(x, p=2, dim=-1): x / max(||x||, eps) == x * rsqrt(max(||x||^2, eps^2))
    sumsq = jnp.sum(pooled * pooled, axis=-1, keepdims=True)               # (TB, 1)
    inv_norm = jax.lax.rsqrt(jnp.maximum(sumsq, sumsq_clamp))
    # Temperature folded into the small (TB, C) operand, not the (TB, NC) logits.
    xn = (pooled * (inv_norm * temperature)).astype(wn_t_ref.dtype)        # (TB, C)

    # Single combined cosine linear against [fc[:base]; dummy] (normalized rows).
    logits = jnp.dot(xn, wn_t_ref[...], preferred_element_type=jnp.float32)

    # Single full-block, lane-dense, unmasked store.
    out_ref[...] = logits.astype(out_ref.dtype)


def mynet_forward_cos(feats, fc_weight, dummy_weight=None, *, base_class,
                      temperature, block_b=128,
                      feats_dtype=jnp.bfloat16, matmul_dtype=jnp.bfloat16,
                      vmem_budget_bytes=40 << 20):
    """MYNET.forward for a mode containing 'cos' (the non-'encoder' branch).

    feats        : (B, L, C)  encoder token output
    fc_weight    : (NC, C)    fc.weight (orthogonally initialized)
    dummy_weight : (NC - base_class, C) or None; None derives it from fc_weight
                   exactly as the PyTorch __init__ does.
    Returns      : (B, NC) = temperature * cat([cos(x, fc[:base]), cos(x, dummy)], -1)
    """
    B, L, C = feats.shape
    if dummy_weight is None:
        # dummy_orthogonal_classifier.weight = fc.weight[base_class:, :]
        dummy_weight = fc_weight[base_class:, :]

    # torch.cat([x1[:, :base], x2], 1) == xn @ normalize(cat([fc[:base], dummy])).T
    # because row-wise L2 normalization is independent per row.
    combined = jnp.concatenate([fc_weight[:base_class], dummy_weight], axis=0)  # (NC, C)
    n_out = combined.shape[0]
    # Lane-dense output width: pad to a multiple of 128 so the store is unmasked.
    n_out_pad = _round_up(n_out, 128)

    # Weight normalization hoisted out of the kernel (done once), pre-transposed so
    # the in-kernel contraction is lane-contiguous, zero-padded on the column axis.
    eps = 1e-12
    w32 = combined.astype(jnp.float32)
    wn = w32 * jax.lax.rsqrt(
        jnp.maximum(jnp.sum(w32 * w32, axis=-1, keepdims=True), eps * eps))
    wn_t = wn.T.astype(matmul_dtype)                                            # (C, NC)
    if n_out_pad != n_out:
        wn_t = jnp.pad(wn_t, ((0, 0), (0, n_out_pad - n_out)))                  # (C, NC_pad)

    # Halve the dominant HBM read: feats stream in bf16 (pooling stays f32-accumulated).
    feats = feats.astype(feats_dtype)
    feats_isize = jnp.dtype(feats_dtype).itemsize
    w_isize = jnp.dtype(matmul_dtype).itemsize

    def vmem_estimate(tb):
        # Sub-32-bit dtypes pack along sublanes: 16 sublanes for 2-byte, 8 for 4-byte.
        f_sub = 8 * (4 // feats_isize)
        w_sub = 8 * (4 // w_isize)
        feats_tile = tb * _round_up(L, f_sub) * _round_up(C, 128) * feats_isize
        w_tile = _round_up(C, w_sub) * n_out_pad * w_isize
        out_tile = _round_up(tb, 8) * n_out_pad * 4
        # Double-buffered feats + out; the resident weight also carries 2 buffers.
        return 2 * feats_tile + 2 * w_tile + 2 * out_tile

    # Batch tile: biggest that fits the VMEM budget (shrink by halving if needed).
    tb = min(block_b, B)
    while tb > 8 and vmem_estimate(tb) > vmem_budget_bytes:
        tb = (tb + 1) // 2
    if tb < B:
        # Keep the (tb, n_out_pad) output block sublane-aligned when tiling.
        tb = max(8, (tb // 8) * 8) if B >= 8 else B

    # Scoped VMEM request: actual need + headroom, capped well below v7x's 64 MiB/TC.
    vmem_limit = int(min(48 << 20,
                         max(16 << 20, vmem_estimate(tb) * 5 // 4 + (2 << 20))))

    grid = (pl.cdiv(B, tb),)
    kernel = functools.partial(
        mynet_cos_kernel,
        temperature=float(temperature),
        # sum = L * mean  =>  clamp ||sum||^2 with (eps * L)^2 for exact semantics.
        sumsq_clamp=float((eps * L) ** 2))

    cost = pl.CostEstimate(
        flops=2 * B * C * n_out_pad + B * L * C + 4 * B * C,
        transcendentals=B,
        bytes_accessed=(B * L * C * feats_isize
                        + C * n_out_pad * w_isize
                        + B * n_out_pad * 4))

    out = pl.pallas_call(
        kernel,
        out_shape=jax.ShapeDtypeStruct((B, n_out_pad), jnp.float32),
        grid_spec=pltpu.PrefetchScalarGridSpec(
            num_scalar_prefetch=0,
            grid=grid,
            in_specs=[
                pl.BlockSpec((tb, L, C), lambda i: (i, 0, 0)),       # batch-tiled feats
                pl.BlockSpec((C, n_out_pad), lambda i: (0, 0)),      # resident weight
            ],
            out_specs=pl.BlockSpec((tb, n_out_pad), lambda i: (i, 0)),
        ),
        compiler_params=pltpu.CompilerParams(
            dimension_semantics=("parallel",),   # double-buffer feats; megacore on v7x
            vmem_limit_bytes=vmem_limit,
        ),
        cost_estimate=cost,
    )(feats, wn_t)

    # NOTE: when B % tb != 0 the last tile pools/normalizes out-of-range rows; those
    # rows never land in rows [0, B) of the output, so they are benign.  The padded
    # classifier columns are exactly zero and are sliced off here.
    return out[:, :n_out]


def orthogonal_init(key, num_classes, num_features):
    """Deterministic analogue of nn.init.orthogonal_ on fc.weight (rows orthonormal)."""
    a = jax.random.normal(key, (num_features, num_classes), dtype=jnp.float32)
    q, _ = jnp.linalg.qr(a)            # columns orthonormal: (num_features, num_classes)
    return q.T                         # (num_classes, num_features), rows orthonormal


def reference_forward_cos(feats, fc_weight, base_class, temperature):
    """Pure-JAX f32 reference matching the PyTorch forward (sanity check)."""
    pooled = jnp.mean(feats.astype(jnp.float32), axis=1)
    eps = 1e-12
    xn = pooled / jnp.maximum(jnp.linalg.norm(pooled, axis=-1, keepdims=True), eps)
    wn = fc_weight / jnp.maximum(jnp.linalg.norm(fc_weight, axis=-1, keepdims=True), eps)
    dummy = fc_weight[base_class:, :]
    dn = dummy / jnp.maximum(jnp.linalg.norm(dummy, axis=-1, keepdims=True), eps)
    x1 = xn @ wn.T
    x2 = xn @ dn.T
    return temperature * jnp.concatenate([x1[:, :base_class], x2], axis=1)


if __name__ == "__main__":
    # Small synthetic shapes consistent with the forward pass.
    B = 2            # batch
    L = 8            # token sequence length (encoder output)
    C = 32           # num_features (synthetic; 768 for Swin, 64/512 for resnets)
    NUM_CLASSES = 16
    BASE_CLASS = 8
    TEMPERATURE = 16.0

    key = jax.random.PRNGKey(0)
    k_feat, k_fc = jax.random.split(key)

    feats = jax.random.normal(k_feat, (B, L, C), dtype=jnp.float32)
    fc_weight = orthogonal_init(k_fc, NUM_CLASSES, C)

    ref = reference_forward_cos(feats, fc_weight, BASE_CLASS, TEMPERATURE)

    # f32 path: must match the pure-JAX reference tightly.
    out_f32 = mynet_forward_cos(
        feats, fc_weight, base_class=BASE_CLASS, temperature=TEMPERATURE,
        feats_dtype=jnp.float32, matmul_dtype=jnp.float32)
    out_f32 = jax.block_until_ready(out_f32)
    assert out_f32.shape == (B, NUM_CLASSES), out_f32.shape
    assert jnp.allclose(out_f32, ref, atol=1e-4, rtol=1e-4), \
        f"f32 max abs err {jnp.max(jnp.abs(out_f32 - ref))}"

    # Default fast path (bf16 feats stream + bf16 MXU operands, f32 accumulation):
    # only bf16 rounding separates it from the f32 reference.
    out_bf16 = mynet_forward_cos(
        feats, fc_weight, base_class=BASE_CLASS, temperature=TEMPERATURE)
    out_bf16 = jax.block_until_ready(out_bf16)
    assert out_bf16.shape == (B, NUM_CLASSES), out_bf16.shape
    assert jnp.allclose(out_bf16, ref, atol=2.5e-1, rtol=5e-2), \
        f"bf16 max abs err {jnp.max(jnp.abs(out_bf16 - ref))}"

    print("KERNEL_OK")
</pallas_src>

<mosaic_0001>
module attributes {stable_mosaic.version = 11 : i64} {
  func.func @mynet_cos_kernel(%arg0: i32, %arg1: memref<2x8x32xf32, #tpu.memory_space<vmem>>, %arg2: memref<32x128xf32, #tpu.memory_space<vmem>>, %arg3: memref<2x128xf32, #tpu.memory_space<vmem>>) attributes {dimension_semantics = [#tpu.dimension_semantics<parallel>], iteration_bounds = array<i64: 1>, scalar_prefetch = 0 : i64, scratch_operands = 0 : i64, tpu.core_type = #tpu.core_type<tc>, window_params = [{transform_indices = @transform_0, window_bounds = array<i64: 2, 8, 32>}, {pipeline_mode = #tpu.pipeline_mode<synchronous>, transform_indices = @transform_1, window_bounds = array<i64: 32, 128>}, {transform_indices = @transform_2, window_bounds = array<i64: 2, 128>}]} {
    %c0 = arith.constant 0 : index
    %c0_0 = arith.constant 0 : index
    %c0_1 = arith.constant 0 : index
    %0 = vector.load %arg1[%c0, %c0_0, %c0_1] : memref<2x8x32xf32, #tpu.memory_space<vmem>>, vector<2x8x32xf32>
    %cst = arith.constant dense<0.000000e+00> : vector<2x32xf32>
    %1 = vector.multi_reduction <add>, %0, %cst [1] : vector<2x8x32xf32> to vector<2x32xf32>
    %2 = arith.mulf %1, %1 : vector<2x32xf32>
    %cst_2 = arith.constant dense<0.000000e+00> : vector<2xf32>
    %3 = vector.multi_reduction <add>, %2, %cst_2 [1] : vector<2x32xf32> to vector<2xf32>
    %4 = vector.shape_cast %3 : vector<2xf32> to vector<2x1xf32>
    %cst_3 = arith.constant 6.400000e-23 : f32
    %5 = vector.broadcast %cst_3 : f32 to vector<2x1xf32>
    %6 = arith.maximumf %4, %5 : vector<2x1xf32>
    %7 = math.rsqrt %6 : vector<2x1xf32>
    %cst_4 = arith.constant 1.600000e+01 : f32
    %8 = vector.broadcast %cst_4 : f32 to vector<2x1xf32>
    %9 = arith.mulf %7, %8 : vector<2x1xf32>
    %10 = vector.broadcast %9 : vector<2x1xf32> to vector<2x32xf32>
    %11 = arith.mulf %1, %10 : vector<2x32xf32>
    %c0_5 = arith.constant 0 : index
    %c0_6 = arith.constant 0 : index
    %12 = vector.load %arg2[%c0_5, %c0_6] : memref<32x128xf32, #tpu.memory_space<vmem>>, vector<32x128xf32>
    %cst_7 = arith.constant dense<0.000000e+00> : vector<2x128xf32>
    %13 = tpu.matmul %11, %12, %cst_7 {dimension_numbers = #tpu.dot_dimension_numbers<[1], [0], [0], [1], [0, 0, 1, 1], [], []>} : vector<2x32xf32>, vector<32x128xf32>, vector<2x128xf32> -> vector<2x128xf32>
    %c0_8 = arith.constant 0 : index
    %c0_9 = arith.constant 0 : index
    %14 = vector.load %arg3[%c0_8, %c0_9] : memref<2x128xf32, #tpu.memory_space<vmem>>, vector<2x128xf32>
    tpu.vector_store %arg3[%c0_8, %c0_9], %13 {strides = array<i32>} : memref<2x128xf32, #tpu.memory_space<vmem>>, vector<2x128xf32>,
    return
  }
  func.func @transform_0(%arg0: i32) -> (i32, i32, i32) {
    %c0_i32 = arith.constant 0 : i32
    %c0_i32_0 = arith.constant 0 : i32
    %c0_i32_1 = arith.constant 0 : i32
    return %arg0, %c0_i32, %c0_i32_0 : i32, i32, i32
  }
  func.func @transform_1(%arg0: i32) -> (i32, i32) {
    %c0_i32 = arith.constant 0 : i32
    %c0_i32_0 = arith.constant 0 : i32
    %c0_i32_1 = arith.constant 0 : i32
    return %c0_i32, %c0_i32_0 : i32, i32
  }
  func.func @transform_2(%arg0: i32) -> (i32, i32) {
    %c0_i32 = arith.constant 0 : i32
    %c0_i32_0 = arith.constant 0 : i32
    return %arg0, %c0_i32 : i32, i32
  }
}

</mosaic_0001>

<llo_original>
// kernel: tpu_custom_call.1
$region0: #{tpu_custom_call.1}
  #allocation0 [shape = 'u32[]', space=smem, size = 0x4, offset = 0x4, fixed_abs, tag = 'smem constant byte address 0x4 - core index']
  #allocation1 [shape = 'u32[144,128]{1,0:T(1,128)}', space=vmem, size = 0x12000, scoped, tag = 'internal scratch']
  %s0 = inlined_call_operand.hbm [shape: f32[2,8,32], index: 0, kind: input, shape index: {}]
  %s1 = inlined_call_operand.hbm [shape: f32[32,128], index: 1, kind: input, shape index: {}]
  %s2 = inlined_call_operand.hbm [shape: f32[2,128], index: 2, kind: output, shape index: {}]
  %s3 = sld [smem:[#allocation0]]
  $region26: #{tpu_custom_call.1} parent=0
    _
  %s5 = ssub.s32 1, %s3
  %s6 = scalar_select 0, %s5, %s3
  $region1: #{tpu_custom_call.1} parent=0
    #allocation2 [shape = 'u8[8192]{0}', space=vmem, size = 0x2000, scoped, tag = 'input window, operand 0, single buffered']
    #allocation3 [shape = 's32[1]{0}', space=sflag, size = 0x4, scoped, tag = 'scoped memory for tpu_custom_call.1']
    #allocation4 [shape = 's32[1]{0}', space=sflag, size = 0x4, scoped, tag = 'scoped memory for tpu_custom_call.1']
    #allocation5 [shape = 'u8[16384]{0}', space=vmem, size = 0x4000, scoped, tag = 'input window, operand 1, single buffered']
    #allocation6 [shape = 's32[1]{0}', space=sflag, size = 0x4, scoped, tag = 'scoped memory for tpu_custom_call.1']
    #allocation7 [shape = 'u8[1024]{0}', space=vmem, size = 0x400, scoped, tag = 'output window, operand 0, single buffered']
    %7 = vsyncpa [#allocation3], 0
    %8 = vsyncpa [#allocation6], 0
    %9 = vsyncpa [#allocation4], 0
    // Predicated region
    $region2: #{tpu_custom_call.1} parent=1 // pred_check
      _
    $region3: #{tpu_custom_call.1} parent=1 // pred_check_branch
      %11 = sbr.rel (0) target = $region5
    $region4: #{tpu_custom_call.1} parent=1 // pred_region
      %s13 = ssub.s32 256, 256
      %14 = vsyncadd [#allocation3], %s13
      %s15 = sshll.u32 [#allocation2], 4
      %s16 = int_to_ptr.vmem [resolvable:$true] %s15
      %21 = dma.hbm_to_vmem [thread:$0]  %s0, 256, %s16, [#allocation3], 128, 128, 8
    $region5: #{tpu_custom_call.1} parent=1 // pred_fallthru
      _
    // Predicated region
    $region6: #{tpu_custom_call.1} parent=1 // pred_check
      _
    $region7: #{tpu_custom_call.1} parent=1 // pred_check_branch
      %23 = sbr.rel (0) target = $region9
    $region8: #{tpu_custom_call.1} parent=1 // pred_region
      %s25 = ssub.s32 512, 512
      %26 = vsyncadd [#allocation6], %s25
      %s27 = sshll.u32 [#allocation5], 4
      %s28 = int_to_ptr.vmem [resolvable:$true] %s27
      %33 = dma.hbm_to_vmem [thread:$0]  %s1, 512, %s28, [#allocation6], 128, 128, 8
    $region9: #{tpu_custom_call.1} parent=1 // pred_fallthru
      _
    // Predicated region
    $region10: #{tpu_custom_call.1} parent=1 // pred_check
      _
    $region11: #{tpu_custom_call.1} parent=1 // pred_check_branch
      %35 = sbr.rel (0) target = $region13
    $region12: #{tpu_custom_call.1} parent=1 // pred_region
      %36 = dma.done [#allocation3], 256
    $region13: #{tpu_custom_call.1} parent=1 // pred_fallthru
      _
    // Predicated region
    $region14: #{tpu_custom_call.1} parent=1 // pred_check
      _
    $region15: #{tpu_custom_call.1} parent=1 // pred_check_branch
      %38 = sbr.rel (0) target = $region17
    $region16: #{tpu_custom_call.1} parent=1 // pred_region
      %39 = dma.done [#allocation6], 512
    $region17: #{tpu_custom_call.1} parent=1 // pred_fallthru
      _
    %v40 = vld [vmem:[#allocation2] sm:$0xff]
    %v41 = vld [vmem:[#allocation2 + $0x8] sm:$0xff]
    %vm42 = vcmask 261120
    %v43 = vsel %vm42, %v40, 0.0
    %v44 = vrot.slane %v43, 4
    %v45 = vadd.f32 %v43, %v44
    %v46 = vrot.slane %v45, 2
    %v47 = vadd.f32 %v45, %v46
    %v48 = vrot.slane %v47, 1
    %v49 = vadd.f32 %v47, %v48
    %v50 = vsel %vm42, %v41, 0.0
    %v51 = vrot.slane %v50, 4
    %v52 = vadd.f32 %v50, %v51
    %v53 = vrot.slane %v52, 2
    %v54 = vadd.f32 %v52, %v53
    %v55 = vrot.slane %v54, 1
    %v56 = vadd.f32 %v54, %v55
    %v57 = vmul.f32 %v49, %v49
    %v58 = vmul.f32 %v56, %v56
    %vm61 = vcmask 1041409
    %v62 = vsel %vm61, %v58, %v57
    %vm64 = vcmask 254976
    %v65 = vsel %vm64, %v62, 0.0
    %66 = vadd.xlane.f32.xlu0 %v65
    %v67 = vpop.xlane.xlu0 %66
    %v68 = vmax.f32 %v67, 6.4e-23
    %v69 = vrsqrt.pop %v68
    %v70 = vmul.f32 %v69, 16.0
    %v72 = vrot.slane %v70, 1
    %v75 = vmul.f32 %v49, %v70
    %v76 = vmul.f32 %v56, %v72
    %v77 = vld [vmem:[#allocation5] sm:$0xff]
    %v78 = vld [vmem:[#allocation5 + $0x8] sm:$0xff]
    %v79 = vld [vmem:[#allocation5 + $0x10] sm:$0xff]
    %v80 = vld [vmem:[#allocation5 + $0x18] sm:$0xff]
    %v83 = vrot.slane %v76, 7
    %v84 = vsel %vm61, %v83, %v75
    %v85 = vsel %vm42, %v84, 0
    %87 = vmatprep.subr.mxu0 0.0
    %88 = vmatpush1.msra.mxu0 0.0
    %89 = vmatprep.subr.mxu0 0.0
    %90 = vmatpush1.msra.mxu0 0.0
    %91 = vmatprep.subr.mxu0 0.0
    %92 = vmatpush1.msra.mxu0 0.0
    %93 = vmatprep.subr.mxu0 0.0
    %94 = vmatpush1.msra.mxu0 0.0
    %95 = vmatprep.subr.mxu0 0.0
    %96 = vmatpush1.msra.mxu0 0.0
    %97 = vmatprep.subr.mxu0 0.0
    %98 = vmatpush1.msra.mxu0 0.0
    %99 = vmatprep.subr.mxu0 0.0
    %100 = vmatpush1.msra.mxu0 0.0
    %101 = vmatprep.subr.mxu0 0.0
    %102 = vmatpush1.msra.mxu0 0.0
    %103 = vmatprep.subr.mxu0 0.0
    %104 = vmatpush1.msra.mxu0 0.0
    %105 = vmatprep.subr.mxu0 0.0
    %106 = vmatpush1.msra.mxu0 0.0
    %107 = vmatprep.subr.mxu0 0.0
    %108 = vmatpush1.msra.mxu0 0.0
    %109 = vmatprep.subr.mxu0 0.0
    %110 = vmatpush1.msra.mxu0 0.0
    %111 = vmatprep.subr.mxu0 0.0
    %112 = vmatpush1.msra.mxu0 %v80
    %113 = vmatprep.subr.mxu0 0.0
    %114 = vmatpush1.msra.mxu0 %v79
    %115 = vmatprep.subr.mxu0 0.0
    %116 = vmatpush1.msra.mxu0 %v78
    %117 = vmatprep.subr.mxu0 0.0
    %118 = vmatpush1.msra.mxu0 %v77
    %119 = vmatprep.subr.mxu0 0.0
    %120 = vmatpush2.msra.mxu0 0.0
    %121 = vmatprep.subr.mxu0 0.0
    %122 = vmatpush2.msra.mxu0 0.0
    %123 = vmatprep.subr.mxu0 0.0
    %124 = vmatpush2.msra.mxu0 0.0
    %125 = vmatprep.subr.mxu0 0.0
    %126 = vmatpush2.msra.mxu0 0.0
    %127 = vmatprep.subr.mxu0 0.0
    %128 = vmatpush2.msra.mxu0 0.0
    %129 = vmatprep.subr.mxu0 0.0
    %130 = vmatpush2.msra.mxu0 0.0
    %131 = vmatprep.subr.mxu0 0.0
    %132 = vmatpush2.msra.mxu0 0.0
    %133 = vmatprep.subr.mxu0 0.0
    %134 = vmatpush2.msra.mxu0 0.0
    %135 = vmatprep.subr.mxu0 0.0
    %136 = vmatpush2.msra.mxu0 0.0
    %137 = vmatprep.subr.mxu0 0.0
    %138 = vmatpush2.msra.mxu0 0.0
    %139 = vmatprep.subr.mxu0 0.0
    %140 = vmatpush2.msra.mxu0 0.0
    %141 = vmatprep.subr.mxu0 0.0
    %142 = vmatpush2.msra.mxu0 0.0
    %143 = vmatprep.subr.mxu0 0.0
    %144 = vmatpush2.msra.mxu0 0.0
    %145 = vmatprep.subr.mxu0 0.0
    %146 = vmatpush2.msra.mxu0 0.0
    %147 = vmatprep.subr.mxu0 0.0
    %148 = vmatpush2.msra.mxu0 0.0
    %149 = vmatprep.subr.mxu0 0.0
    %150 = vmatpush2.msra.mxu0 0.0
    %151 = vmatprep.mubr.f32.mxu0 0.0
    %152 = vmatmul.mubr.f32.gmra.mxu0 %v85
    %v153 = vpop.f32.mrf.mxu0
    %v154 = vadd.f32 0.0, %v153
    %v155 = vpop.f32.mrf.mxu0
    %156 = vdwg.mxu0
    %157 = vst [vmem:[#allocation7] sm:$0x3] %v154
    // Predicated region
    $region18: #{tpu_custom_call.1} parent=1 // pred_check
      _
    $region19: #{tpu_custom_call.1} parent=1 // pred_check_branch
      %159 = sbr.rel (0) target = $region21
    $region20: #{tpu_custom_call.1} parent=1 // pred_region
      %s161 = ssub.s32 32, 32
      %162 = vsyncadd [#allocation4], %s161
      %s164 = sshll.u32 [#allocation7], 4
      %s165 = int_to_ptr.vmem [resolvable:$true] %s164
      %167 = dma.vmem_to_hbm [thread:$0]  %s165, 32, %s2, [#allocation4]
    $region21: #{tpu_custom_call.1} parent=1 // pred_fallthru
      _
    // Predicated region
    $region22: #{tpu_custom_call.1} parent=1 // pred_check
      _
    $region23: #{tpu_custom_call.1} parent=1 // pred_check_branch
      %169 = sbr.rel (0) target = $region25
    $region24: #{tpu_custom_call.1} parent=1 // pred_region
      %170 = dma.done [#allocation4], 32
    $region25: #{tpu_custom_call.1} parent=1 // pred_fallthru
      _
    %171 = vsyncpa [#allocation3], 1
    %172 = vsyncpa [#allocation6], 1
    %173 = vsyncpa [#allocation4], 1

</llo_original>
